<compile_context>
chip_gen: v6e
topology: v6e:2x2x1
jax: 0.10.0
libtpu: 0.0.40
codegen_flags: <defaults>
</compile_context>

<pallas_src>
import functools

import jax
import jax.numpy as jnp
from jax.experimental import pallas as pl
from jax.experimental.pallas import tpu as pltpu


def _round_up(x, m):
    return ((x + m - 1) // m) * m


def _conv_kernel_halo(xc_ref, xn_ref, w_ref, b_ref, o_ref, win_ref, *,
                      offs, tl, halo_pad):
    """Fused Conv1d + folded-BN + clamp for one (C_out tile, L tile, batch) cell.

    xc_ref : (1, TL, CI)         bf16  current L-tile of the stride-folded input
    xn_ref : (1, HALO_PAD, CI)   bf16  halo rows from the start of the next tile
    w_ref  : (n_offs, TC, CI)    bf16  BN-folded weights, taps grouped by offset
    b_ref  : (TC, 1)             f32   folded conv-bias + BN shift
    o_ref  : (1, TC, TL)               output tile (length on lanes)
    win_ref: (TL + HALO_PAD, CI) bf16  VMEM scratch: contiguous halo'd window
    """
    tc = o_ref.shape[1]
    # Assemble the halo'd window once with aligned stores; the tap loop then
    # reads statically-offset slices of it (no dynamic sublane offsets).
    win_ref[pl.ds(0, tl), :] = xc_ref[0]
    win_ref[pl.ds(tl, halo_pad), :] = xn_ref[0]

    acc = jnp.zeros((tc, tl), jnp.float32)
    for i, o in enumerate(offs):                      # static unroll over offsets
        x_slc = win_ref[pl.ds(o, tl), :]              # (TL, CI), static offset o
        acc = acc + jax.lax.dot_general(
            w_ref[i], x_slc,
            dimension_numbers=(((1,), (1,)), ((), ())),
            preferred_element_type=jnp.float32)

    y = acc + b_ref[...]                              # bias broadcast over lanes (L)
    o_ref[0] = jnp.clip(y, 0.0, 20.0).astype(o_ref.dtype)


def _conv_kernel_single(xc_ref, w_ref, b_ref, o_ref):
    """Single-offset case (1x1 conv, or receptive field <= stride): one matmul."""
    acc = jax.lax.dot_general(
        w_ref[0], xc_ref[0],
        dimension_numbers=(((1,), (1,)), ((), ())),
        preferred_element_type=jnp.float32)
    y = acc + b_ref[...]
    o_ref[0] = jnp.clip(y, 0.0, 20.0).astype(o_ref.dtype)


def _vmem_limit_bytes(bytes_needed):
    """Generation-aware VMEM budget: comfortable headroom for pipelining, but
    never more than ~85% of physical VMEM (v7x has only 64 MiB per core)."""
    phys = None
    try:
        info = pltpu.get_tpu_info()
        phys = int(getattr(info, "vmem_capacity_bytes", 0)) or None
    except Exception:
        phys = None
    if phys is None:
        phys = 64 * 2**20            # smallest physical VMEM across v5e/v6e/v7x
    cap = int(phys * 0.85)
    want = max(4 * int(bytes_needed), 48 * 2**20)
    return int(min(want, cap))


def conv_block_forward(x, weight, bias, gamma, beta, running_mean, running_var, *,
                       kernel_size, padding, stride, dilation=1, eps=1e-5,
                       l_tile=256, c_tile=128, out_dtype=jnp.float32):
    """Fused Conv1d + BatchNorm1d(eval) + clamp(0, 20) (+ identity dropout).

    x: (N, C_in, L) float32.  Returns (N, C_out, L_out) `out_dtype`.
    `l_tile` / `c_tile` are sweepable per generation (VMEM vs. step overhead).
    """
    N, C_in, L = x.shape
    C_out = weight.shape[0]
    K = kernel_size
    L_out = (L + 2 * padding - dilation * (K - 1) - 1) // stride + 1
    assert L_out > 0, "conv produces an empty output"

    # ---- stride folding: group taps by reshaped-row offset -------------------
    # Output l reads padded-input rows l*stride + t*dilation.  After reshaping
    # the input to (L/stride, stride*C_in), that row is reshaped row
    # l + (t*d)//stride, channel slot (t*d) % stride.  Taps sharing an offset
    # merge into one (C_out, stride*C_in) matrix => fewer, deeper matmuls and
    # no strided sublane reads for stride > 1.
    offs = sorted({(t * dilation) // stride for t in range(K)})
    n_offs = len(offs)
    max_off = offs[-1]
    off_pos = {o: i for i, o in enumerate(offs)}

    # ---- tile geometry --------------------------------------------------------
    TL = _round_up(min(l_tile, _round_up(L_out, 128)), 128)   # L tile (lanes)
    num_j = -(-L_out // TL)
    L_out_pad = num_j * TL

    TC = _round_up(min(c_tile, _round_up(C_out, 8)), 8)       # C_out tile (sublanes)
    C_out_pad = _round_up(C_out, TC)
    num_c = C_out_pad // TC

    CI = stride * C_in                                         # folded contraction
    CI_pad = _round_up(CI, 16)                                 # bf16-friendly

    use_halo = max_off > 0
    halo_pad = 0
    if use_halo:
        assert max_off <= TL, "receptive field larger than one L tile"
        h = 16
        while h <= TL:                                         # smallest multiple of
            if h >= max_off and TL % h == 0:                   # 16 dividing TL that
                halo_pad = h                                   # covers the halo
                break
            h += 16
        assert halo_pad > 0
    L_r_pad = num_j * TL + halo_pad                            # reshaped rows kept

    # ---- fold BatchNorm (eval) + conv bias into a weight / bias pair ---------
    bn_scale = gamma / jnp.sqrt(running_var + eps)                  # (C_out,)
    w_fold = weight * bn_scale[:, None, None]                       # (C_out, C_in, K)
    b_fold = (bias - running_mean) * bn_scale + beta                # (C_out,)

    W = jnp.zeros((n_offs, C_out, CI), jnp.float32)
    for t in range(K):
        o = (t * dilation) // stride
        s = (t * dilation) % stride
        W = W.at[off_pos[o], :, s * C_in:(s + 1) * C_in].set(w_fold[:, :, t])
    W = jnp.pad(W, ((0, 0), (0, C_out_pad - C_out), (0, CI_pad - CI)))
    W = W.astype(jnp.bfloat16)
    # Bias kept in f32 (exact); with C_out tiling its lane-padded VMEM block is
    # only TC*128*4 B per buffer, so the (TC, 1) layout is negligible.
    b2d = jnp.pad(b_fold, (0, C_out_pad - C_out)).reshape(C_out_pad, 1)
    b2d = b2d.astype(jnp.float32)

    # ---- stride-folded, zero-padded input (single fused XLA pass over x) -----
    x_nlc = jnp.transpose(x, (0, 2, 1))                             # (N, L, C_in)
    total_rows = L_r_pad * stride
    pad_right = total_rows - L - padding
    assert pad_right >= 0
    x_p = jnp.pad(x_nlc, ((0, 0), (padding, pad_right), (0, 0))).astype(jnp.bfloat16)
    x_r = x_p.reshape(N, L_r_pad, CI)
    x_r = jnp.pad(x_r, ((0, 0), (0, 0), (0, CI_pad - CI)))

    # ---- grid / block specs ---------------------------------------------------
    # Grid order: (C_out tiles, L tiles, batch).  All axes are embarrassingly
    # parallel (the tap/C_in reduction lives inside the kernel); the big folded
    # weight block only changes with the outermost axis.
    grid = (num_c, num_j, N)

    x_cur_spec = pl.BlockSpec((1, TL, CI_pad), lambda c, j, n: (n, j, 0))
    w_spec = pl.BlockSpec((n_offs, TC, CI_pad), lambda c, j, n: (0, c, 0))
    b_spec = pl.BlockSpec((TC, 1), lambda c, j, n: (c, 0))
    out_spec = pl.BlockSpec((1, TC, TL), lambda c, j, n: (n, c, j))

    if use_halo:
        nxt_blk = TL // halo_pad        # halo-sized block index of next tile's head
        x_nxt_spec = pl.BlockSpec((1, halo_pad, CI_pad),
                                  lambda c, j, n: (n, (j + 1) * nxt_blk, 0))
        in_specs = [x_cur_spec, x_nxt_spec, w_spec, b_spec]
        operands = (x_r, x_r, W, b2d)
        kernel = functools.partial(_conv_kernel_halo, offs=tuple(offs), tl=TL,
                                   halo_pad=halo_pad)
        scratch_shapes = [pltpu.VMEM((TL + halo_pad, CI_pad), jnp.bfloat16)]
    else:
        in_specs = [x_cur_spec, w_spec, b_spec]
        operands = (x_r, W, b2d)
        kernel = _conv_kernel_single
        scratch_shapes = []

    # Per-step VMEM: double-buffered blocks + scratch window + accumulator.
    blk_bytes = (2 * TL * CI_pad * 2
                 + (2 * halo_pad * CI_pad * 2 if use_halo else 0)
                 + 2 * n_offs * TC * CI_pad * 2
                 + 2 * TC * 128 * 4
                 + 2 * TC * TL * 4
                 + ((TL + halo_pad) * CI_pad * 2 if use_halo else 0)
                 + TC * TL * 4)

    flops = 2 * N * L_out_pad * C_out_pad * CI_pad * n_offs
    bytes_accessed = (x_r.size * 2 * num_c + W.size * 2
                      + N * C_out_pad * L_out_pad * jnp.dtype(out_dtype).itemsize)
    cost = pl.CostEstimate(flops=int(flops), transcendentals=0,
                           bytes_accessed=int(bytes_accessed))

    out_full = pl.pallas_call(
        kernel,
        out_shape=jax.ShapeDtypeStruct((N, C_out_pad, L_out_pad), out_dtype),
        grid=grid,
        in_specs=in_specs,
        out_specs=out_spec,
        scratch_shapes=scratch_shapes,
        compiler_params=pltpu.CompilerParams(
            dimension_semantics=("parallel", "parallel", "parallel"),
            vmem_limit_bytes=_vmem_limit_bytes(blk_bytes)),
        cost_estimate=cost,
    )(*operands)

    # Padded output channels are exactly zero; padded length columns hold
    # clamp(folded_bias, 0, 20) and are discarded by this slice -- do not alias
    # or donate the padded buffer downstream without it.
    # TODO(synk): training-mode BatchNorm (batch statistics) and Dropout masking
    # are not implemented; this is the eval-mode forward pass.
    return out_full[:, :C_out, :L_out]


# ------------------------------ self-test ------------------------------------

def _reference(x, weight, bias, gamma, beta, mean, var, *, stride, padding,
               dilation, eps=1e-5):
    conv = jax.lax.conv_general_dilated(
        x, weight, window_strides=(stride,), padding=[(padding, padding)],
        rhs_dilation=(dilation,), dimension_numbers=("NCH", "OIH", "NCH"))
    scale = gamma / jnp.sqrt(var + eps)
    y = (conv + bias[None, :, None] - mean[None, :, None]) * scale[None, :, None] \
        + beta[None, :, None]
    return jnp.clip(y, 0.0, 20.0)


def _run_case(key, *, N, C_in, C_out, K, padding, stride, dilation, L,
              l_tile=256, c_tile=128):
    ks = jax.random.split(key, 7)
    x = jax.random.normal(ks[0], (N, C_in, L), jnp.float32)
    weight = jax.random.normal(ks[1], (C_out, C_in, K), jnp.float32) / float((C_in * K) ** 0.5)
    bias = 0.1 * jax.random.normal(ks[2], (C_out,), jnp.float32)
    gamma = 1.0 + 0.1 * jax.random.normal(ks[3], (C_out,), jnp.float32)
    beta = 0.1 * jax.random.normal(ks[4], (C_out,), jnp.float32)
    mean = 0.1 * jax.random.normal(ks[5], (C_out,), jnp.float32)
    var = 0.5 + jnp.abs(0.5 * jax.random.normal(ks[6], (C_out,), jnp.float32))

    out = conv_block_forward(x, weight, bias, gamma, beta, mean, var,
                             kernel_size=K, padding=padding, stride=stride,
                             dilation=dilation, l_tile=l_tile, c_tile=c_tile)
    out = jax.block_until_ready(out)

    ref = _reference(x, weight, bias, gamma, beta, mean, var,
                     stride=stride, padding=padding, dilation=dilation)
    assert out.shape == ref.shape, (out.shape, ref.shape)
    err = float(jnp.max(jnp.abs(out.astype(jnp.float32) - ref)))
    scale = float(jnp.max(jnp.abs(ref))) + 1e-6
    assert err <= 2e-2 * scale + 1e-3, f"max abs err {err} (ref scale {scale})"


if __name__ == "__main__":
    root = jax.random.PRNGKey(0)
    k1, k2, k3, k4 = jax.random.split(root, 4)
    # 1) tiny config (docstring-scale shapes): single L tile, halo path.
    _run_case(k1, N=2, C_in=4, C_out=8, K=3, padding=1, stride=1, dilation=1, L=16)
    # 2) multi-L-tile + stride 2 + C_out tiling + channel padding (scaled-down
    #    wav2letter front conv): exercises the stride-folding & halo DMA paths.
    _run_case(k2, N=2, C_in=5, C_out=40, K=9, padding=4, stride=2, dilation=1,
              L=600, l_tile=128, c_tile=16)
    # 3) dilation > 1.
    _run_case(k3, N=1, C_in=6, C_out=10, K=5, padding=6, stride=1, dilation=3, L=64)
    # 4) 1x1 conv: single-offset fast path (no halo, one matmul per tile).
    _run_case(k4, N=2, C_in=16, C_out=32, K=1, padding=0, stride=1, dilation=1, L=200)
    print("KERNEL_OK")
</pallas_src>

<mosaic_0001>
module attributes {stable_mosaic.version = 11 : i64} {
  func.func @_conv_kernel_halo(%arg0: i32, %arg1: i32, %arg2: i32, %arg3: memref<1x128x16xbf16, #tpu.memory_space<vmem>>, %arg4: memref<1x16x16xbf16, #tpu.memory_space<vmem>>, %arg5: memref<3x8x16xbf16, #tpu.memory_space<vmem>>, %arg6: memref<8x1xf32, #tpu.memory_space<vmem>>, %arg7: memref<1x8x128xf32, #tpu.memory_space<vmem>>, %arg8: memref<144x16xbf16, #tpu.memory_space<vmem>>) attributes {dimension_semantics = [#tpu.dimension_semantics<parallel>, #tpu.dimension_semantics<parallel>, #tpu.dimension_semantics<parallel>], iteration_bounds = array<i64: 1, 1, 2>, scalar_prefetch = 0 : i64, scratch_operands = 1 : i64, tpu.core_type = #tpu.core_type<tc>, window_params = [{transform_indices = @transform_0, window_bounds = array<i64: 1, 128, 16>}, {transform_indices = @transform_1, window_bounds = array<i64: 1, 16, 16>}, {transform_indices = @transform_2, window_bounds = array<i64: 3, 8, 16>}, {transform_indices = @transform_3, window_bounds = array<i64: 8, 1>}, {transform_indices = @transform_4, window_bounds = array<i64: 1, 8, 128>}]} {
    %c0 = arith.constant 0 : index
    %c0_0 = arith.constant 0 : index
    %c0_1 = arith.constant 0 : index
    %0 = vector.load %arg3[%c0, %c0_0, %c0_1] : memref<1x128x16xbf16, #tpu.memory_space<vmem>>, vector<1x128x16xbf16>
    %1 = vector.shape_cast %0 : vector<1x128x16xbf16> to vector<128x16xbf16>
    %c0_2 = arith.constant 0 : index
    %c0_3 = arith.constant 0 : index
    %2 = vector.load %arg8[%c0_2, %c0_3] : memref<144x16xbf16, #tpu.memory_space<vmem>>, vector<128x16xbf16>
    tpu.vector_store %arg8[%c0_2, %c0_3], %1 {strides = array<i32>} : memref<144x16xbf16, #tpu.memory_space<vmem>>, vector<128x16xbf16>,
    %c0_4 = arith.constant 0 : index
    %c0_5 = arith.constant 0 : index
    %c0_6 = arith.constant 0 : index
    %3 = vector.load %arg4[%c0_4, %c0_5, %c0_6] : memref<1x16x16xbf16, #tpu.memory_space<vmem>>, vector<1x16x16xbf16>
    %4 = vector.shape_cast %3 : vector<1x16x16xbf16> to vector<16x16xbf16>
    %c128 = arith.constant 128 : index
    %c0_7 = arith.constant 0 : index
    %5 = vector.load %arg8[%c128, %c0_7] : memref<144x16xbf16, #tpu.memory_space<vmem>>, vector<16x16xbf16>
    tpu.vector_store %arg8[%c128, %c0_7], %4 {strides = array<i32>} : memref<144x16xbf16, #tpu.memory_space<vmem>>, vector<16x16xbf16>,
    %cst = arith.constant 0.000000e+00 : f32
    %6 = vector.broadcast %cst : f32 to vector<8x128xf32>
    %c0_8 = arith.constant 0 : index
    %c0_9 = arith.constant 0 : index
    %7 = vector.load %arg8[%c0_8, %c0_9] : memref<144x16xbf16, #tpu.memory_space<vmem>>, vector<128x16xbf16>
    %c0_10 = arith.constant 0 : index
    %c0_11 = arith.constant 0 : index
    %c0_12 = arith.constant 0 : index
    %8 = vector.load %arg5[%c0_10, %c0_11, %c0_12] : memref<3x8x16xbf16, #tpu.memory_space<vmem>>, vector<1x8x16xbf16>
    %9 = vector.shape_cast %8 : vector<1x8x16xbf16> to vector<8x16xbf16>
    %cst_13 = arith.constant dense<0.000000e+00> : vector<8x128xf32>
    %10 = tpu.matmul %9, %7, %cst_13 {dimension_numbers = #tpu.dot_dimension_numbers<[1], [1], [0], [0], [0, 0, 1, 0], [], []>} : vector<8x16xbf16>, vector<128x16xbf16>, vector<8x128xf32> -> vector<8x128xf32>
    %11 = arith.addf %6, %10 : vector<8x128xf32>
    %c1 = arith.constant 1 : index
    %c0_14 = arith.constant 0 : index
    %12 = vector.load %arg8[%c1, %c0_14] : memref<144x16xbf16, #tpu.memory_space<vmem>>, vector<128x16xbf16>
    %c1_15 = arith.constant 1 : index
    %c0_16 = arith.constant 0 : index
    %c0_17 = arith.constant 0 : index
    %13 = vector.load %arg5[%c1_15, %c0_16, %c0_17] : memref<3x8x16xbf16, #tpu.memory_space<vmem>>, vector<1x8x16xbf16>
    %14 = vector.shape_cast %13 : vector<1x8x16xbf16> to vector<8x16xbf16>
    %cst_18 = arith.constant dense<0.000000e+00> : vector<8x128xf32>
    %15 = tpu.matmul %14, %12, %cst_18 {dimension_numbers = #tpu.dot_dimension_numbers<[1], [1], [0], [0], [0, 0, 1, 0], [], []>} : vector<8x16xbf16>, vector<128x16xbf16>, vector<8x128xf32> -> vector<8x128xf32>
    %16 = arith.addf %11, %15 : vector<8x128xf32>
    %c2 = arith.constant 2 : index
    %c0_19 = arith.constant 0 : index
    %17 = vector.load %arg8[%c2, %c0_19] : memref<144x16xbf16, #tpu.memory_space<vmem>>, vector<128x16xbf16>
    %c2_20 = arith.constant 2 : index
    %c0_21 = arith.constant 0 : index
    %c0_22 = arith.constant 0 : index
    %18 = vector.load %arg5[%c2_20, %c0_21, %c0_22] : memref<3x8x16xbf16, #tpu.memory_space<vmem>>, vector<1x8x16xbf16>
    %19 = vector.shape_cast %18 : vector<1x8x16xbf16> to vector<8x16xbf16>
    %cst_23 = arith.constant dense<0.000000e+00> : vector<8x128xf32>
    %20 = tpu.matmul %19, %17, %cst_23 {dimension_numbers = #tpu.dot_dimension_numbers<[1], [1], [0], [0], [0, 0, 1, 0], [], []>} : vector<8x16xbf16>, vector<128x16xbf16>, vector<8x128xf32> -> vector<8x128xf32>
    %21 = arith.addf %16, %20 : vector<8x128xf32>
    %c0_24 = arith.constant 0 : index
    %c0_25 = arith.constant 0 : index
    %22 = vector.load %arg6[%c0_24, %c0_25] : memref<8x1xf32, #tpu.memory_space<vmem>>, vector<8x1xf32>
    %23 = vector.broadcast %22 : vector<8x1xf32> to vector<8x128xf32>
    %24 = arith.addf %21, %23 : vector<8x128xf32>
    %cst_26 = arith.constant 0.000000e+00 : f32
    %cst_27 = arith.constant 2.000000e+01 : f32
    %25 = vector.broadcast %cst_26 : f32 to vector<8x128xf32>
    %26 = arith.maximumf %25, %24 : vector<8x128xf32>
    %27 = vector.broadcast %cst_27 : f32 to vector<8x128xf32>
    %28 = arith.minimumf %27, %26 : vector<8x128xf32>
    %c0_28 = arith.constant 0 : index
    %c0_29 = arith.constant 0 : index
    %c0_30 = arith.constant 0 : index
    %29 = vector.load %arg7[%c0_28, %c0_29, %c0_30] : memref<1x8x128xf32, #tpu.memory_space<vmem>>, vector<1x8x128xf32>
    %30 = vector.shape_cast %29 : vector<1x8x128xf32> to vector<8x128xf32>
    %31 = vector.shape_cast %28 : vector<8x128xf32> to vector<1x8x128xf32>
    tpu.vector_store %arg7[%c0_28, %c0_29, %c0_30], %31 {strides = array<i32>} : memref<1x8x128xf32, #tpu.memory_space<vmem>>, vector<1x8x128xf32>,
    return
  }
  func.func @transform_0(%arg0: i32, %arg1: i32, %arg2: i32) -> (i32, i32, i32) {
    %c0_i32 = arith.constant 0 : i32
    %c0_i32_0 = arith.constant 0 : i32
    return %arg2, %arg1, %c0_i32 : i32, i32, i32
  }
  func.func @transform_1(%arg0: i32, %arg1: i32, %arg2: i32) -> (i32, i32, i32) {
    %c1_i32 = arith.constant 1 : i32
    %0 = arith.addi %arg1, %c1_i32 : i32
    %c8_i32 = arith.constant 8 : i32
    %1 = arith.muli %0, %c8_i32 : i32
    %c0_i32 = arith.constant 0 : i32
    %c0_i32_0 = arith.constant 0 : i32
    return %arg2, %1, %c0_i32 : i32, i32, i32
  }
  func.func @transform_2(%arg0: i32, %arg1: i32, %arg2: i32) -> (i32, i32, i32) {
    %c0_i32 = arith.constant 0 : i32
    %c0_i32_0 = arith.constant 0 : i32
    %c0_i32_1 = arith.constant 0 : i32
    return %c0_i32, %arg0, %c0_i32_0 : i32, i32, i32
  }
  func.func @transform_3(%arg0: i32, %arg1: i32, %arg2: i32) -> (i32, i32) {
    %c0_i32 = arith.constant 0 : i32
    %c0_i32_0 = arith.constant 0 : i32
    return %arg0, %c0_i32 : i32, i32
  }
  func.func @transform_4(%arg0: i32, %arg1: i32, %arg2: i32) -> (i32, i32, i32) {
    %c0_i32 = arith.constant 0 : i32
    return %arg2, %arg0, %arg1 : i32, i32, i32
  }
}

</mosaic_0001>

<llo_original>
// kernel: tpu_custom_call.1
$region0: #{tpu_custom_call.1}
  #allocation0 [shape = 'u32[]', space=smem, size = 0x4, offset = 0x4, fixed_abs, tag = 'smem constant byte address 0x4 - core index']
  #allocation1 [shape = 'u32[144,128]{1,0:T(1,128)}', space=vmem, size = 0x12000, scoped, tag = 'internal scratch']
  #allocation2 [shape = 'bf16[144,16]{1,0:T(8,128)(2,1)}', space=vmem, size = 0x9000, scoped, tag = 'scratch operand']
  %s0 = inlined_call_operand.vmem [shape: bf16[2,144,16], index: 0, kind: input, shape index: {}]
  %s1 = inlined_call_operand.vmem [shape: bf16[2,144,16], index: 1, kind: input, shape index: {}]
  %s2 = inlined_call_operand.vmem [shape: bf16[3,8,16], index: 2, kind: input, shape index: {}]
  %s3 = inlined_call_operand.vmem [shape: f32[8,1], index: 3, kind: input, shape index: {}]
  %s4 = inlined_call_operand.hbm [shape: f32[2,8,128], index: 4, kind: output, shape index: {}]
  %s5 = sld [smem:[#allocation0]]
  $region49: #{tpu_custom_call.1} parent=0
    _
  %s7 = ssub.s32 1, %s5
  %s8 = scalar_select 0, %s7, %s5
  $region1: #{tpu_custom_call.1} parent=0
    #allocation3 [shape = 'u8[8192]{0}', space=vmem, size = 0x2000, scoped, tag = 'output window, operand 0']
    #allocation4 [shape = 's32[2]{0}', space=sflag, size = 0x8, scoped, tag = 'scoped memory for tpu_custom_call.1']
    %9 = vsyncpa [#allocation4], 0
    %s10 = scalar_lea.sflag [#allocation4], 1
    %11 = vsyncpa %s10, 0
    loop: start=0, step=1, limit=4
    $region2: #{tpu_custom_call.1} parent=1 // loop_pre_header
      _
    $region3: #{tpu_custom_call.1} parent=1 // loop_header
      %s13 = sphi 0, %s17
      %p14 = scmp.ge.s32.totalorder %s13, 4
      %s20 = sphi 0, %s39
      %s21 = sphi 0, %s35
      %s22 = sphi 0, %s31
      %s23 = sphi 0, %s20
      %s24 = sphi 0, %s21
      %s25 = sphi 0, %s22
      %s26 = sphi 0, %s23
      %s27 = sphi 0, %s24
      %s28 = sphi 0, %s25
      %s44 = sphi 0, %s46
      %s47 = sphi 0, %s44
      %s48 = sphi 0, %s47
      %s64 = sphi 0, %s48
      %s76 = sphi 0, %s78
      %s79 = sphi 0, %s76
      %s80 = sphi 0, %s79
      %s96 = sphi 0, %s80
      %s102 = sphi 0, %s104
      %s105 = sphi 0, %s102
      %s106 = sphi 0, %s105
      %s122 = sphi 0, %s106
      %s128 = sphi 0, %s130
      %s131 = sphi 0, %s128
      %s132 = sphi 0, %s131
      %s148 = sphi 0, %s132
      %s158 = sphi 0, %s160
      %s161 = sphi 0, %s158
      %s162 = sphi 0, %s161
      %s178 = sphi 0, %s162
    $region4: #{tpu_custom_call.1} parent=1 // loop_header_branch
      %16 = sbr.rel (%p14) target = $region8
    $region5: #{tpu_custom_call.1} parent=1 // loop_body
      %s18 = ssub.s32 %s13, 1
      %s19 = ssub.s32 %s13, 2
      %s29 = sadd.s32 1, %s22
      %p30 = scmp.ge.s32.totalorder %s29, 2
      %s31 = scalar_select %p30, 0, %s29
      %s32 = sadd.s32 1, %s21
      %s33 = scalar_select %p30, %s32, %s21
      %p34 = scmp.ge.s32.totalorder %s33, 1
      %s35 = scalar_select %p34, 0, %s33
      %s36 = sadd.s32 1, %s20
      %s37 = scalar_select %p34, %s36, %s20
      %p38 = scmp.ge.s32.totalorder %s37, 1
      %s39 = scalar_select %p38, 0, %s37
      %s40 = ssub.s32 %s22, %s31
      %s41 = ssub.s32 %s21, %s35
      %s42 = sor.u32 %s40, %s41
      %p43 = scmp.eq.s32.totalorder %s42, 0
      %s45 = sadd.s32 %s44, 1
      %s46 = scalar_select %p43, %s44, %s45
      %p49 = pneg %p43
      %p50 = scmp.eq.s32.totalorder %s13, 1
      %p51 = por %p49, %p50
      %p52 = scmp.ne.s32.totalorder %s44, %s47
      %p53 = scmp.eq.s32.totalorder %s13, 0
      %p54 = por %p52, %p53
      %p55 = scmp.ne.s32.totalorder %s44, %s47
      %p56 = scmp.eq.s32.totalorder %s18, 1
      %p57 = por %p55, %p56
      %p58 = scmp.ne.s32.totalorder %s47, %s48
      %p59 = scmp.eq.s32.totalorder %s18, 0
      %p60 = por %p58, %p59
      %p61 = scmp.ne.s32.totalorder %s47, %s48
      %p62 = scmp.eq.s32.totalorder %s19, 1
      %p63 = por %p61, %p62
      %p65 = scmp.ne.s32.totalorder %s48, %s64
      %p66 = scmp.eq.s32.totalorder %s19, 0
      %p67 = por %p65, %p66
      %s68 = sadd.s32 %s21, 1
      %s69 = smul.u32 %s68, 8
      %s70 = sadd.s32 %s35, 1
      %s71 = smul.u32 %s70, 8
      %s72 = ssub.s32 %s22, %s31
      %s73 = ssub.s32 %s69, %s71
      %s74 = sor.u32 %s72, %s73
      %p75 = scmp.eq.s32.totalorder %s74, 0
      %s77 = sadd.s32 %s76, 1
      %s78 = scalar_select %p75, %s76, %s77
      %p81 = pneg %p75
      %p82 = scmp.eq.s32.totalorder %s13, 1
      %p83 = por %p81, %p82
      %p84 = scmp.ne.s32.totalorder %s76, %s79
      %p85 = scmp.eq.s32.totalorder %s13, 0
      %p86 = por %p84, %p85
      %p87 = scmp.ne.s32.totalorder %s76, %s79
      %p88 = scmp.eq.s32.totalorder %s18, 1
      %p89 = por %p87, %p88
      %p90 = scmp.ne.s32.totalorder %s79, %s80
      %p91 = scmp.eq.s32.totalorder %s18, 0
      %p92 = por %p90, %p91
      %p93 = scmp.ne.s32.totalorder %s79, %s80
      %p94 = scmp.eq.s32.totalorder %s19, 1
      %p95 = por %p93, %p94
      %p97 = scmp.ne.s32.totalorder %s80, %s96
      %p98 = scmp.eq.s32.totalorder %s19, 0
      %p99 = por %p97, %p98
      %s100 = ssub.s32 %s20, %s39
      %p101 = scmp.eq.s32.totalorder %s100, 0
      %s103 = sadd.s32 %s102, 1
      %s104 = scalar_select %p101, %s102, %s103
      %p107 = pneg %p101
      %p108 = scmp.eq.s32.totalorder %s13, 1
      %p109 = por %p107, %p108
      %p110 = scmp.ne.s32.totalorder %s102, %s105
      %p111 = scmp.eq.s32.totalorder %s13, 0
      %p112 = por %p110, %p111
      %p113 = scmp.ne.s32.totalorder %s102, %s105
      %p114 = scmp.eq.s32.totalorder %s18, 1
      %p115 = por %p113, %p114
      %p116 = scmp.ne.s32.totalorder %s105, %s106
      %p117 = scmp.eq.s32.totalorder %s18, 0
      %p118 = por %p116, %p117
      %p119 = scmp.ne.s32.totalorder %s105, %s106
      %p120 = scmp.eq.s32.totalorder %s19, 1
      %p121 = por %p119, %p120
      %p123 = scmp.ne.s32.totalorder %s106, %s122
      %p124 = scmp.eq.s32.totalorder %s19, 0
      %p125 = por %p123, %p124
      %s126 = ssub.s32 %s20, %s39
      %p127 = scmp.eq.s32.totalorder %s126, 0
      %s129 = sadd.s32 %s128, 1
      %s130 = scalar_select %p127, %s128, %s129
      %p133 = pneg %p127
      %p134 = scmp.eq.s32.totalorder %s13, 1
      %p135 = por %p133, %p134
      %p136 = scmp.ne.s32.totalorder %s128, %s131
      %p137 = scmp.eq.s32.totalorder %s13, 0
      %p138 = por %p136, %p137
      %p139 = scmp.ne.s32.totalorder %s128, %s131
      %p140 = scmp.eq.s32.totalorder %s18, 1
      %p141 = por %p139, %p140
      %p142 = scmp.ne.s32.totalorder %s131, %s132
      %p143 = scmp.eq.s32.totalorder %s18, 0
      %p144 = por %p142, %p143
      %p145 = scmp.ne.s32.totalorder %s131, %s132
      %p146 = scmp.eq.s32.totalorder %s19, 1
      %p147 = por %p145, %p146
      %p149 = scmp.ne.s32.totalorder %s132, %s148
      %p150 = scmp.eq.s32.totalorder %s19, 0
      %p151 = por %p149, %p150
      %s152 = ssub.s32 %s22, %s31
      %s153 = ssub.s32 %s20, %s39
      %s154 = sor.u32 %s152, %s153
      %s155 = ssub.s32 %s21, %s35
      %s156 = sor.u32 %s154, %s155
      %p157 = scmp.eq.s32.totalorder %s156, 0
      %s159 = sadd.s32 %s158, 1
      %s160 = scalar_select %p157, %s158, %s159
      %p163 = pneg %p157
      %p164 = scmp.eq.s32.totalorder %s13, 1
      %p165 = por %p163, %p164
      %p166 = scmp.ne.s32.totalorder %s158, %s161
      %p167 = scmp.eq.s32.totalorder %s13, 0
      %p168 = por %p166, %p167
      %p169 = scmp.ne.s32.totalorder %s158, %s161
      %p170 = scmp.eq.s32.totalorder %s18, 1
      %p171 = por %p169, %p170
      %p172 = scmp.ne.s32.totalorder %s161, %s162
      %p173 = scmp.eq.s32.totalorder %s18, 0
      %p174 = por %p172, %p173
      %p175 = scmp.ne.s32.totalorder %s161, %s162
      %p176 = scmp.eq.s32.totalorder %s19, 1
      %p177 = por %p175, %p176
      %p179 = scmp.ne.s32.totalorder %s162, %s178
      %p180 = scmp.eq.s32.totalorder %s19, 0
      %p181 = por %p179, %p180
      %p182 = scmp.le.s32.totalorder 1, %s13
      %p183 = scmp.lt.s32.totalorder %s13, 3
      %p184 = pnand %p182, %p183
      %p185 = pneg %p184
      // Predicated region
      $region9: #{tpu_custom_call.1} parent=5 // pred_check
        _
      $region10: #{tpu_custom_call.1} parent=5 // pred_check_branch
        %187 = sbr.rel (%p184) target = $region12
      $region11: #{tpu_custom_call.1} parent=5 // pred_region
        %s188 = ssub.s32 %s13, 1
        // Predicated region
        $region13: #{tpu_custom_call.1} parent=11 // pred_check
          %p189 = pneg %p118
        $region14: #{tpu_custom_call.1} parent=11 // pred_check_branch
          %191 = sbr.rel (%p189) target = $region16
        $region15: #{tpu_custom_call.1} parent=11 // pred_region
          %p192 = scmp.lt.s32.totalorder %s23, 0
          %s193 = scalar_select %p192, %s23, 0
          %s194 = smul.addr %s193, 4
          %s195 = scalar_lea.vmem %s2, %s194
        $region16: #{tpu_custom_call.1} parent=11 // pred_fallthru
          _
        // Predicated region
        $region17: #{tpu_custom_call.1} parent=11 // pred_check
          %p196 = pneg %p144
        $region18: #{tpu_custom_call.1} parent=11 // pred_check_branch
          %198 = sbr.rel (%p196) target = $region20
        $region19: #{tpu_custom_call.1} parent=11 // pred_region
          %p199 = scmp.lt.s32.totalorder %s23, 0
          %s200 = scalar_select %p199, %s23, 0
          %s201 = smul.addr %s200, 8
          %s202 = scalar_lea.vmem %s3, %s201
        $region20: #{tpu_custom_call.1} parent=11 // pred_fallthru
          _
      $region12: #{tpu_custom_call.1} parent=5 // pred_fallthru
        _
      %p203 = scmp.lt.s32.totalorder %s13, 2
      // Predicated region
      $region21: #{tpu_custom_call.1} parent=5 // pred_check
        %p204 = pneg %p203
      $region22: #{tpu_custom_call.1} parent=5 // pred_check_branch
        %206 = sbr.rel (%p204) target = $region24
      $region23: #{tpu_custom_call.1} parent=5 // pred_region
        // Predicated region
        $region25: #{tpu_custom_call.1} parent=23 // pred_check
          %p207 = pneg %p54
        $region26: #{tpu_custom_call.1} parent=23 // pred_check_branch
          %209 = sbr.rel (%p207) target = $region28
        $region27: #{tpu_custom_call.1} parent=23 // pred_region
          %s210 = smul.u32 16, %s21
          %s211 = ssub.s32 18, %s210
          %p212 = scmp.lt.s32.totalorder %s211, 16
          %s213 = scalar_select %p212, %s211, 16
          %s214 = smul.u32 64, %s213
          %p215 = scmp.lt.s32.totalorder %s22, 1
          %s216 = scalar_select %p215, %s22, 1
          %p217 = scmp.lt.s32.totalorder %s210, 17
          %s218 = scalar_select %p217, %s210, 17
          %s219 = smul.addr %s216, 18
          %s220 = sadd.s32 %s218, %s219
          %s221 = smul.addr %s220, 4
          %s222 = scalar_lea.vmem %s0, %s221
          %s223 = smul.u32 16, %s21
          %s224 = ssub.s32 18, %s223
          %p225 = scmp.lt.s32.totalorder %s224, 16
          %s226 = scalar_select %p225, %s224, 16
          %s227 = smul.u32 64, %s226
        $region28: #{tpu_custom_call.1} parent=23 // pred_fallthru
          _
        // Predicated region
        $region29: #{tpu_custom_call.1} parent=23 // pred_check
          %p228 = pneg %p86
        $region30: #{tpu_custom_call.1} parent=23 // pred_check_branch
          %230 = sbr.rel (%p228) target = $region32
        $region31: #{tpu_custom_call.1} parent=23 // pred_region
          %s231 = sadd.s32 %s21, 1
          %s232 = smul.u32 %s231, 8
          %s233 = smul.u32 2, %s232
          %p234 = scmp.lt.s32.totalorder %s22, 1
          %s235 = scalar_select %p234, %s22, 1
          %p236 = scmp.lt.s32.totalorder %s233, 17
          %s237 = scalar_select %p236, %s233, 17
          %s238 = smul.addr %s235, 18
          %s239 = sadd.s32 %s237, %s238
          %s240 = smul.addr %s239, 4
          %s241 = scalar_lea.vmem %s1, %s240
          %s242 = sadd.s32 %s21, 1
          %s243 = smul.u32 %s242, 8
          %s244 = smul.u32 2, %s243
        $region32: #{tpu_custom_call.1} parent=23 // pred_fallthru
          _
      $region24: #{tpu_custom_call.1} parent=5 // pred_fallthru
        _
      %p245 = scmp.le.s32.totalorder 1, %s13
      %p246 = scmp.lt.s32.totalorder %s13, 3
      %p247 = pnand %p245, %p246
      %p248 = pneg %p247
      // Predicated region
      $region33: #{tpu_custom_call.1} parent=5 // pred_check
        _
      $region34: #{tpu_custom_call.1} parent=5 // pred_check_branch
        %250 = sbr.rel (%p247) target = $region36
      $region35: #{tpu_custom_call.1} parent=5 // pred_region
        %s251 = ssub.s32 %s13, 1
        %s252 = smul.u32 16, %s24
        %s253 = ssub.s32 18, %s252
        %p254 = scmp.lt.s32.totalorder %s253, 16
        %s255 = scalar_select %p254, %s253, 16
        %s256 = smul.u32 64, %s255
        %p257 = scmp.lt.s32.totalorder %s25, 1
        %s258 = scalar_select %p257, %s25, 1
        %p259 = scmp.lt.s32.totalorder %s252, 17
        %s260 = scalar_select %p259, %s252, 17
        %s261 = smul.addr %s258, 18
        %s262 = sadd.s32 %s260, %s261
        %s263 = smul.addr %s262, 4
        %s264 = scalar_lea.vmem %s0, %s263
        %p265 = pneg %p60
        %p266 = pneg %p57
        %s267 = sadd.s32 %s24, 1
        %s268 = smul.u32 %s267, 8
        %s269 = smul.u32 2, %s268
        %p270 = scmp.lt.s32.totalorder %s25, 1
        %s271 = scalar_select %p270, %s25, 1
        %p272 = scmp.lt.s32.totalorder %s269, 17
        %s273 = scalar_select %p272, %s269, 17
        %s274 = smul.addr %s271, 18
        %s275 = sadd.s32 %s273, %s274
        %s276 = smul.addr %s275, 4
        %s277 = scalar_lea.vmem %s1, %s276
        %p278 = pneg %p92
        %p279 = pneg %p89
        %p280 = scmp.lt.s32.totalorder %s23, 0
        %s281 = scalar_select %p280, %s23, 0
        %s282 = smul.addr %s281, 4
        %s283 = scalar_lea.vmem %s2, %s282
        %p284 = pneg %p118
        %p285 = pneg %p115
        %p286 = scmp.lt.s32.totalorder %s23, 0
        %s287 = scalar_select %p286, %s23, 0
        %s288 = smul.addr %s287, 8
        %s289 = scalar_lea.vmem %s3, %s288
        %p290 = pneg %p144
        %p291 = pneg %p141
        %p292 = pneg %p174
        %p293 = pneg %p171
        %s294 = sand.u32 %s161, 1
        %s295 = scalar_lea.sflag [#allocation4], %s294
        %s296 = sand.u32 %s161, 1
        %s297 = smul.addr %s296, 8
        %s298 = scalar_lea.vmem [#allocation3], %s297
        %s299 = smul.u32 16, %s24
        %s300 = ssub.s32 18, %s299
        %p301 = scmp.lt.s32.totalorder %s300, 16
        %s302 = scalar_select %p301, %s300, 16
        %s303 = smul.u32 64, %s302
        %p304 = scmp.lt.s32.totalorder %s25, 1
        %s305 = scalar_select %p304, %s25, 1
        %p306 = scmp.lt.s32.totalorder %s299, 17
        %s307 = scalar_select %p306, %s299, 17
        %s308 = smul.addr %s305, 18
        %s309 = sadd.s32 %s307, %s308
        %s310 = smul.addr %s309, 4
        %s311 = scalar_lea.vmem %s0, %s310
        %s312 = smul.u32 16, %s24
        %s313 = ssub.s32 18, %s312
        %p314 = scmp.lt.s32.totalorder %s313, 16
        %s315 = scalar_select %p314, %s313, 16
        %s316 = smul.u32 64, %s315
        %s317 = sadd.s32 %s24, 1
        %s318 = smul.u32 %s317, 8
        %s319 = smul.u32 2, %s318
        %p320 = scmp.lt.s32.totalorder %s25, 1
        %s321 = scalar_select %p320, %s25, 1
        %p322 = scmp.lt.s32.totalorder %s319, 17
        %s323 = scalar_select %p322, %s319, 17
        %s324 = smul.addr %s321, 18
        %s325 = sadd.s32 %s323, %s324
        %s326 = smul.addr %s325, 4
        %s327 = scalar_lea.vmem %s1, %s326
        %s328 = sadd.s32 %s24, 1
        %s329 = smul.u32 %s328, 8
        %s330 = smul.u32 2, %s329
        %p331 = scmp.lt.s32.totalorder %s23, 0
        %s332 = scalar_select %p331, %s23, 0
        %s333 = smul.addr %s332, 4
        %s334 = scalar_lea.vmem %s2, %s333
        %p335 = scmp.lt.s32.totalorder %s23, 0
        %s336 = scalar_select %p335, %s23, 0
        %s337 = smul.addr %s336, 8
        %s338 = scalar_lea.vmem %s3, %s337
        %v340 = vld [vmem:[%s311] sm:$0xf]
        %v341 = vld [vmem:[%s311 + $0x4] sm:$0xf]
        %v342 = vld [vmem:[%s311 + $0x8] sm:$0xf]
        %v343 = vld [vmem:[%s311 + $0xc] sm:$0xf]
        %v344 = vld [vmem:[%s311 + $0x10] sm:$0xf]
        %v345 = vld [vmem:[%s311 + $0x14] sm:$0xf]
        %v346 = vld [vmem:[%s311 + $0x18] sm:$0xf]
        %v347 = vld [vmem:[%s311 + $0x1c] sm:$0xf]
        %v348 = vld [vmem:[%s311 + $0x20] sm:$0xf]
        %v349 = vld [vmem:[%s311 + $0x24] sm:$0xf]
        %v350 = vld [vmem:[%s311 + $0x28] sm:$0xf]
        %v351 = vld [vmem:[%s311 + $0x2c] sm:$0xf]
        %v352 = vld [vmem:[%s311 + $0x30] sm:$0xf]
        %v353 = vld [vmem:[%s311 + $0x34] sm:$0xf]
        %v354 = vld [vmem:[%s311 + $0x38] sm:$0xf]
        %v355 = vld [vmem:[%s311 + $0x3c] sm:$0xf]
        %vm356 = vcmask 125952
        %357 = vst.msk [vmem:[#allocation2] sm:$0xf] %vm356, %v340
        %358 = vst.msk [vmem:[#allocation2 + $0x4] sm:$0xf] %vm356, %v341
        %359 = vst.msk [vmem:[#allocation2 + $0x8] sm:$0xf] %vm356, %v342
        %360 = vst.msk [vmem:[#allocation2 + $0xc] sm:$0xf] %vm356, %v343
        %361 = vst.msk [vmem:[#allocation2 + $0x10] sm:$0xf] %vm356, %v344
        %362 = vst.msk [vmem:[#allocation2 + $0x14] sm:$0xf] %vm356, %v345
        %363 = vst.msk [vmem:[#allocation2 + $0x18] sm:$0xf] %vm356, %v346
        %364 = vst.msk [vmem:[#allocation2 + $0x1c] sm:$0xf] %vm356, %v347
        %365 = vst.msk [vmem:[#allocation2 + $0x20] sm:$0xf] %vm356, %v348
        %366 = vst.msk [vmem:[#allocation2 + $0x24] sm:$0xf] %vm356, %v349
        %367 = vst.msk [vmem:[#allocation2 + $0x28] sm:$0xf] %vm356, %v350
        %368 = vst.msk [vmem:[#allocation2 + $0x2c] sm:$0xf] %vm356, %v351
        %369 = vst.msk [vmem:[#allocation2 + $0x30] sm:$0xf] %vm356, %v352
        %370 = vst.msk [vmem:[#allocation2 + $0x34] sm:$0xf] %vm356, %v353
        %371 = vst.msk [vmem:[#allocation2 + $0x38] sm:$0xf] %vm356, %v354
        %372 = vst.msk [vmem:[#allocation2 + $0x3c] sm:$0xf] %vm356, %v355
        %v373 = vld [vmem:[%s327] sm:$0xf]
        %v374 = vld [vmem:[%s327 + $0x4] sm:$0xf]
        %375 = vst.msk [vmem:[#allocation2 + $0x40] sm:$0xf] %vm356, %v373
        %376 = vst.msk [vmem:[#allocation2 + $0x44] sm:$0xf] %vm356, %v374
        %v377 = vld [vmem:[#allocation2] sm:$0xf]
        %v378 = vld [vmem:[#allocation2 + $0x4] sm:$0xf]
        %v379 = vld [vmem:[#allocation2 + $0x8] sm:$0xf]
        %v380 = vld [vmem:[#allocation2 + $0xc] sm:$0xf]
        %v381 = vld [vmem:[#allocation2 + $0x10] sm:$0xf]
        %v382 = vld [vmem:[#allocation2 + $0x14] sm:$0xf]
        %v383 = vld [vmem:[#allocation2 + $0x18] sm:$0xf]
        %v384 = vld [vmem:[#allocation2 + $0x1c] sm:$0xf]
        %v385 = vld [vmem:[#allocation2 + $0x20] sm:$0xf]
        %v386 = vld [vmem:[#allocation2 + $0x24] sm:$0xf]
        %v387 = vld [vmem:[#allocation2 + $0x28] sm:$0xf]
        %v388 = vld [vmem:[#allocation2 + $0x2c] sm:$0xf]
        %v389 = vld [vmem:[#allocation2 + $0x30] sm:$0xf]
        %v390 = vld [vmem:[#allocation2 + $0x34] sm:$0xf]
        %v391 = vld [vmem:[#allocation2 + $0x38] sm:$0xf]
        %v392 = vld [vmem:[#allocation2 + $0x3c] sm:$0xf]
        %v393 = vld [vmem:[%s334] sm:$0xf]
        %v394 = vld [vmem:[#allocation2 + $0x40] sm:$0x1]
        %s395 = scalar_lea.vmem %s334, 4
        %v396 = vld [vmem:[%s395] sm:$0xf]
        %v414 = vunpack.c.l.b16 %v377
        %v415 = vunpack.c.l.b16 %v378
        %v416 = vunpack.c.l.b16 %v379
        %v417 = vunpack.c.l.b16 %v380
        %v418 = vunpack.c.l.b16 %v381
        %v419 = vunpack.c.l.b16 %v382
        %v420 = vunpack.c.l.b16 %v383
        %v421 = vunpack.c.l.b16 %v384
        %v422 = vunpack.c.l.b16 %v385
        %v423 = vunpack.c.l.b16 %v386
        %v424 = vunpack.c.l.b16 %v387
        %v425 = vunpack.c.l.b16 %v388
        %v426 = vunpack.c.l.b16 %v389
        %v427 = vunpack.c.l.b16 %v390
        %v428 = vunpack.c.l.b16 %v391
        %v429 = vunpack.c.l.b16 %v392
        %v430 = vunpack.c.l.b16 %v394
        %v431 = vpack.c.b16 %v415, %v414
        %v432 = vpack.c.b16 %v417, %v416
        %v433 = vpack.c.b16 %v419, %v418
        %v434 = vpack.c.b16 %v421, %v420
        %v435 = vpack.c.b16 %v423, %v422
        %v436 = vpack.c.b16 %v425, %v424
        %v437 = vpack.c.b16 %v427, %v426
        %v438 = vpack.c.b16 %v429, %v428
        %v439 = vpack.c.b16 %v430, %v430
        %vm440 = vsmask.f32 7424
        %v442 = vshrl.u32 %v431, 16
        %v444 = vshll.u32 %v431, 16
        %v446 = vrot.slane %v444, 1
        %v447 = vor.u32 %v442, %v446
        %v449 = vshll.u32 %v432, 16
        %v451 = vrot.slane %v449, 1
        %v452 = vsel %vm440, %v447, %v451
        %v453 = vshrl.u32 %v432, 16
        %v455 = vor.u32 %v453, %v451
        %v457 = vshll.u32 %v433, 16
        %v459 = vrot.slane %v457, 1
        %v460 = vsel %vm440, %v455, %v459
        %v461 = vshrl.u32 %v433, 16
        %v463 = vor.u32 %v461, %v459
        %v465 = vshll.u32 %v434, 16
        %v467 = vrot.slane %v465, 1
        %v468 = vsel %vm440, %v463, %v467
        %v469 = vshrl.u32 %v434, 16
        %v471 = vor.u32 %v469, %v467
        %v473 = vshll.u32 %v435, 16
        %v475 = vrot.slane %v473, 1
        %v476 = vsel %vm440, %v471, %v475
        %v477 = vshrl.u32 %v435, 16
        %v479 = vor.u32 %v477, %v475
        %v481 = vshll.u32 %v436, 16
        %v483 = vrot.slane %v481, 1
        %v484 = vsel %vm440, %v479, %v483
        %v485 = vshrl.u32 %v436, 16
        %v487 = vor.u32 %v485, %v483
        %v489 = vshll.u32 %v437, 16
        %v491 = vrot.slane %v489, 1
        %v492 = vsel %vm440, %v487, %v491
        %v493 = vshrl.u32 %v437, 16
        %v495 = vor.u32 %v493, %v491
        %v497 = vshll.u32 %v438, 16
        %v499 = vrot.slane %v497, 1
        %v500 = vsel %vm440, %v495, %v499
        %v501 = vshrl.u32 %v438, 16
        %v503 = vor.u32 %v501, %v499
        %v505 = vshll.u32 %v439, 16
        %v507 = vrot.slane %v505, 1
        %v508 = vsel %vm440, %v503, %v507
        %vm509 = vcmask 130048
        %v511 = vsel %vm509, %v396, 0
        %v514 = vsel %vm509, %v452, 0
        %v517 = vsel %vm509, %v460, 0
        %v520 = vsel %vm509, %v468, 0
        %v523 = vsel %vm509, %v476, 0
        %v526 = vsel %vm509, %v484, 0
        %v529 = vsel %vm509, %v492, 0
        %v532 = vsel %vm509, %v500, 0
        %v535 = vsel %vm509, %v508, 0
        %537 = vmatprep.subr.bf16.mxu0 0
        %538 = vmatpush1.bf16.xpose.msra.mxu0 %v535
        %539 = vmatprep.subr.bf16.mxu0 0
        %540 = vmatpush1.bf16.xpose.msra.mxu0 %v532
        %541 = vmatprep.subr.bf16.mxu0 0
        %542 = vmatpush1.bf16.xpose.msra.mxu0 %v529
        %543 = vmatprep.subr.bf16.mxu0 0
        %544 = vmatpush1.bf16.xpose.msra.mxu0 %v526
        %545 = vmatprep.subr.bf16.mxu0 0
        %546 = vmatpush1.bf16.xpose.msra.mxu0 %v523
        %547 = vmatprep.subr.bf16.mxu0 0
        %548 = vmatpush1.bf16.xpose.msra.mxu0 %v520
        %549 = vmatprep.subr.bf16.mxu0 0
        %550 = vmatpush1.bf16.xpose.msra.mxu0 %v517
        %551 = vmatprep.subr.bf16.mxu0 0
        %552 = vmatpush1.bf16.xpose.msra.mxu0 %v514
        %553 = vmatprep.subr.bf16.mxu0 0
        %554 = vmatpush2.bf16.xpose.msra.mxu0 0
        %555 = vmatprep.subr.bf16.mxu0 0
        %556 = vmatpush2.bf16.xpose.msra.mxu0 0
        %557 = vmatprep.subr.bf16.mxu0 0
        %558 = vmatpush2.bf16.xpose.msra.mxu0 0
        %559 = vmatprep.subr.bf16.mxu0 0
        %560 = vmatpush2.bf16.xpose.msra.mxu0 0
        %561 = vmatprep.subr.bf16.mxu0 0
        %562 = vmatpush2.bf16.xpose.msra.mxu0 0
        %563 = vmatprep.subr.bf16.mxu0 0
        %564 = vmatpush2.bf16.xpose.msra.mxu0 0
        %565 = vmatprep.subr.bf16.mxu0 0
        %566 = vmatpush2.bf16.xpose.msra.mxu0 0
        %567 = vmatprep.subr.bf16.mxu0 0
        %568 = vmatpush2.bf16.xpose.msra.mxu0 0
        %569 = vmatprep.mubr.bf16.mxu0 0
        %570 = vmatmul.mubr.bf16.gmra.mxu0 %v511
        %v571 = vpop.f32.mrf.mxu0
        %v572 = vadd.f32 0.0, %v571
        %v573 = vpop.f32.mrf.mxu0
        %v574 = vpop.f32.mrf.mxu0
        %v575 = vpop.f32.mrf.mxu0
        %576 = vdwg.mxu0
        %v578 = vsel %vm509, %v393, 0
        %v580 = vsel %vm509, %v431, 0
        %v582 = vsel %vm509, %v432, 0
        %v584 = vsel %vm509, %v433, 0
        %v586 = vsel %vm509, %v434, 0
        %v588 = vsel %vm509, %v435, 0
        %v590 = vsel %vm509, %v436, 0
        %v592 = vsel %vm509, %v437, 0
        %v594 = vsel %vm509, %v438, 0
        %596 = vmatprep.subr.bf16.mxu0 0
        %597 = vmatpush1.bf16.xpose.msra.mxu0 %v594
        %598 = vmatprep.subr.bf16.mxu0 0
        %599 = vmatpush1.bf16.xpose.msra.mxu0 %v592
        %600 = vmatprep.subr.bf16.mxu0 0
        %601 = vmatpush1.bf16.xpose.msra.mxu0 %v590
        %602 = vmatprep.subr.bf16.mxu0 0
        %603 = vmatpush1.bf16.xpose.msra.mxu0 %v588
        %604 = vmatprep.subr.bf16.mxu0 0
        %605 = vmatpush1.bf16.xpose.msra.mxu0 %v586
        %606 = vmatprep.subr.bf16.mxu0 0
        %607 = vmatpush1.bf16.xpose.msra.mxu0 %v584
        %608 = vmatprep.subr.bf16.mxu0 0
        %609 = vmatpush1.bf16.xpose.msra.mxu0 %v582
        %610 = vmatprep.subr.bf16.mxu0 0
        %611 = vmatpush1.bf16.xpose.msra.mxu0 %v580
        %612 = vmatprep.subr.bf16.mxu0 0
        %613 = vmatpush2.bf16.xpose.msra.mxu0 0
        %614 = vmatprep.subr.bf16.mxu0 0
        %615 = vmatpush2.bf16.xpose.msra.mxu0 0
        %616 = vmatprep.subr.bf16.mxu0 0
        %617 = vmatpush2.bf16.xpose.msra.mxu0 0
        %618 = vmatprep.subr.bf16.mxu0 0
        %619 = vmatpush2.bf16.xpose.msra.mxu0 0
        %620 = vmatprep.subr.bf16.mxu0 0
        %621 = vmatpush2.bf16.xpose.msra.mxu0 0
        %622 = vmatprep.subr.bf16.mxu0 0
        %623 = vmatpush2.bf16.xpose.msra.mxu0 0
        %624 = vmatprep.subr.bf16.mxu0 0
        %625 = vmatpush2.bf16.xpose.msra.mxu0 0
        %626 = vmatprep.subr.bf16.mxu0 0
        %627 = vmatpush2.bf16.xpose.msra.mxu0 0
        %628 = vmatprep.mubr.bf16.mxu0 0
        %629 = vmatmul.mubr.bf16.gmra.mxu0 %v578
        %v630 = vpop.f32.mrf.mxu0
        %v631 = vadd.f32 %v572, %v630
        %v632 = vpop.f32.mrf.mxu0
        %v633 = vpop.f32.mrf.mxu0
        %v634 = vpop.f32.mrf.mxu0
        %635 = vdwg.mxu0
        %v636 = vld [vmem:[#allocation2] sm:$0xe]
        %s637 = scalar_lea.vmem %s334, 8
        %v638 = vld [vmem:[%s637] sm:$0xf]
        %v640 = vunpack.c.l.b16 %v636
        %v641 = vpack.c.b16 %v415, %v640
        %vm642 = vcmask 1046528
        %v643 = vrot.slane %v641, 1
        %v644 = vrot.slane %v432, 1
        %v645 = vsel %vm642, %v643, %v644
        %v646 = vrot.slane %v433, 1
        %v647 = vsel %vm642, %v644, %v646
        %v648 = vrot.slane %v434, 1
        %v649 = vsel %vm642, %v646, %v648
        %v650 = vrot.slane %v435, 1
        %v651 = vsel %vm642, %v648, %v650
        %v652 = vrot.slane %v436, 1
        %v653 = vsel %vm642, %v650, %v652
        %v654 = vrot.slane %v437, 1
        %v655 = vsel %vm642, %v652, %v654
        %v656 = vrot.slane %v438, 1
        %v657 = vsel %vm642, %v654, %v656
        %v658 = vrot.slane %v439, 1
        %v659 = vsel %vm642, %v656, %v658
        %v661 = vsel %vm509, %v638, 0
        %v664 = vsel %vm509, %v645, 0
        %v667 = vsel %vm509, %v647, 0
        %v670 = vsel %vm509, %v649, 0
        %v673 = vsel %vm509, %v651, 0
        %v676 = vsel %vm509, %v653, 0
        %v679 = vsel %vm509, %v655, 0
        %v682 = vsel %vm509, %v657, 0
        %v685 = vsel %vm509, %v659, 0
        %687 = vmatprep.subr.bf16.mxu0 0
        %688 = vmatpush1.bf16.xpose.msra.mxu0 %v685
        %689 = vmatprep.subr.bf16.mxu0 0
        %690 = vmatpush1.bf16.xpose.msra.mxu0 %v682
        %691 = vmatprep.subr.bf16.mxu0 0
        %692 = vmatpush1.bf16.xpose.msra.mxu0 %v679
        %693 = vmatprep.subr.bf16.mxu0 0
        %694 = vmatpush1.bf16.xpose.msra.mxu0 %v676
        %695 = vmatprep.subr.bf16.mxu0 0
        %696 = vmatpush1.bf16.xpose.msra.mxu0 %v673
        %697 = vmatprep.subr.bf16.mxu0 0
        %698 = vmatpush1.bf16.xpose.msra.mxu0 %v670
        %699 = vmatprep.subr.bf16.mxu0 0
        %700 = vmatpush1.bf16.xpose.msra.mxu0 %v667
        %701 = vmatprep.subr.bf16.mxu0 0
        %702 = vmatpush1.bf16.xpose.msra.mxu0 %v664
        %703 = vmatprep.subr.bf16.mxu0 0
        %704 = vmatpush2.bf16.xpose.msra.mxu0 0
        %705 = vmatprep.subr.bf16.mxu0 0
        %706 = vmatpush2.bf16.xpose.msra.mxu0 0
        %707 = vmatprep.subr.bf16.mxu0 0
        %708 = vmatpush2.bf16.xpose.msra.mxu0 0
        %709 = vmatprep.subr.bf16.mxu0 0
        %710 = vmatpush2.bf16.xpose.msra.mxu0 0
        %711 = vmatprep.subr.bf16.mxu0 0
        %712 = vmatpush2.bf16.xpose.msra.mxu0 0
        %713 = vmatprep.subr.bf16.mxu0 0
        %714 = vmatpush2.bf16.xpose.msra.mxu0 0
        %715 = vmatprep.subr.bf16.mxu0 0
        %716 = vmatpush2.bf16.xpose.msra.mxu0 0
        %717 = vmatprep.subr.bf16.mxu0 0
        %718 = vmatpush2.bf16.xpose.msra.mxu0 0
        %719 = vmatprep.mubr.bf16.mxu0 0
        %720 = vmatmul.mubr.bf16.gmra.mxu0 %v661
        %v721 = vpop.f32.mrf.mxu0
        %v722 = vadd.f32 0.0, %v721
        %v723 = vpop.f32.mrf.mxu0
        %v724 = vpop.f32.mrf.mxu0
        %v725 = vpop.f32.mrf.mxu0
        %726 = vdwg.mxu0
        %v727 = vadd.f32 %v631, %v722
        %v728 = vld [vmem:[%s338] sm:$0xff]
        %730 = vset.pattern.permute.xlu0 0
        %731 = vperm.xlu0 %730, %v728
        %v732 = vpop.permute.xlu0 %731
        %v734 = vadd.f32 %v727, %v732
        %v735 = vmax.f32 %v734, 0.0
        %v736 = vmin.f32 %v735, 20.0
        %737 = vst [vmem:[%s298] sm:$0xff] %v736
        %s738 = sand.u32 %s161, 1
        %s739 = scalar_lea.sflag [#allocation4], %s738
        %s740 = sand.u32 %s161, 1
        %s741 = smul.addr %s740, 8
        %s742 = scalar_lea.vmem [#allocation3], %s741
        // Predicated region
        $region37: #{tpu_custom_call.1} parent=35 // pred_check
          %p743 = pneg %p171
        $region38: #{tpu_custom_call.1} parent=35 // pred_check_branch
          %745 = sbr.rel (%p743) target = $region40
        $region39: #{tpu_custom_call.1} parent=35 // pred_region
          %s747 = ssub.s32 128, 128
          %748 = vsyncadd %s739, %s747
          %s749 = sadd.s32 %s24, %s23
          %s750 = sadd.s32 %s749, %s25
          %s751 = smul.addr %s750, 128
          %s752 = scalar_lea.hbm %s4, %s751
          %s754 = sshll.u32 %s742, 4
          %s755 = int_to_ptr.vmem [resolvable:$true] %s754
          %757 = dma.vmem_to_hbm [thread:$0]  %s755, 128, %s752, %s739
        $region40: #{tpu_custom_call.1} parent=35 // pred_fallthru
          _
      $region36: #{tpu_custom_call.1} parent=5 // pred_fallthru
        _
      %p758 = scmp.le.s32.totalorder 2, %s13
      // Predicated region
      $region41: #{tpu_custom_call.1} parent=5 // pred_check
        %p759 = pneg %p758
      $region42: #{tpu_custom_call.1} parent=5 // pred_check_branch
        %761 = sbr.rel (%p759) target = $region44
      $region43: #{tpu_custom_call.1} parent=5 // pred_region
        %s762 = ssub.s32 %s13, 2
        // Predicated region
        $region45: #{tpu_custom_call.1} parent=43 // pred_check
          %p763 = pneg %p177
        $region46: #{tpu_custom_call.1} parent=43 // pred_check_branch
          %765 = sbr.rel (%p763) target = $region48
        $region47: #{tpu_custom_call.1} parent=43 // pred_region
          %s766 = sand.u32 %s162, 1
          %s767 = scalar_lea.sflag [#allocation4], %s766
          %s768 = sand.u32 %s162, 1
          %s769 = smul.addr %s768, 8
          %s770 = scalar_lea.vmem [#allocation3], %s769
          %771 = dma.done %s767, 128
        $region48: #{tpu_custom_call.1} parent=43 // pred_fallthru
          _
      $region44: #{tpu_custom_call.1} parent=5 // pred_fallthru
        _
    $region6: #{tpu_custom_call.1} parent=1 // loop_footer
      %s17 = sadd.s32 1, %s13
    $region7: #{tpu_custom_call.1} parent=1 // loop_footer_branch
      %12 = sbr.rel target = $region3
    $region8: #{tpu_custom_call.1} parent=1 // loop_exit
      _
    %772 = vsyncpa [#allocation4], 1
    %s773 = scalar_lea.sflag [#allocation4], 1
    %774 = vsyncpa %s773, 1

</llo_original>
